<compile_context>
chip_gen: v5e
topology: v5e:2x2
jax: 0.10.0
libtpu: 0.0.40
codegen_flags: <defaults>
</compile_context>

<pallas_src>
import functools

import jax
import jax.numpy as jnp
from jax.experimental import pallas as pl
from jax.experimental.pallas import tpu as pltpu


def _highway_kernel(x_ref, wtc_ref, btc_ref, o_ref, *, n_layers, C):
    # x_ref / o_ref: (1, C, tile_l) NCL block.
    # wtc_ref: (n_layers, 2C, C) bf16, rows [0,C) = transform, rows [C,2C) = fc.
    # btc_ref: (n_layers, 2C, 1) f32, stacked the same way.
    x = x_ref[0].astype(jnp.float32)                       # (C, tile_l) f32

    def layer(i, x):
        xb = x.astype(jnp.bfloat16)                        # bf16 MXU operands
        # One fused matmul per layer: (2C, C) @ (C, tile_l) -> (2C, tile_l).
        y = (jnp.dot(wtc_ref[i], xb, preferred_element_type=jnp.float32)
             + btc_ref[i])
        t = jax.nn.sigmoid(y[:C])                          # sublane-aligned half
        c = y[C:]                                          # dropout == identity (eval)
        # c*t + x*(1-t)  ==  x + t*(c - x): one fewer VPU op per layer.
        return jnp.maximum(x + t * (c - x), 0.0)

    if n_layers <= 4:
        for i in range(n_layers):                          # static unroll: full LLO visibility
            x = layer(i, x)
    else:
        # Deep stacks: bound live ranges with a real loop (dynamic wtc_ref[i]).
        x = jax.lax.fori_loop(0, n_layers, layer, x)

    o_ref[0] = x.astype(o_ref.dtype)


def _vmem_budget_bytes():
    """Generation-aware VMEM budget: ~half the physical per-core VMEM, capped."""
    try:
        phys = pltpu.get_tpu_info().vmem_capacity_bytes
    except Exception:
        phys = 64 * 1024 * 1024            # smallest supported per-core VMEM (v7x)
    return int(min(max(24 * 1024 * 1024, phys // 2), 64 * 1024 * 1024))


def _vmem_bytes_needed(C, tile_l, n_layers, act_bytes):
    io = 2 * 2 * C * tile_l * act_bytes                      # double-buffered x + out tiles
    w = 2 * n_layers * 2 * C * (C * 2 + 4)                   # double-buffered bf16 W + f32 b
    tmp = 24 * C * tile_l                                    # live temps: x, xb, y(2C), t, c
    return io + w + tmp


def _choose_tile_l(L, C, n_layers, act_bytes, budget):
    """Largest lane-dense (multiple-of-128) L tile that fits the VMEM budget.

    L is NOT required to divide evenly: the grid uses pl.cdiv and Pallas bounds
    the ragged last block.  Only tiny L (<= 128) uses a full-extent block
    (always a legal block shape)."""
    if L <= 128:
        return L
    for t in (2048, 1024, 512, 256, 128):
        if t <= L and _vmem_bytes_needed(C, t, n_layers, act_bytes) <= budget:
            return t
    return 128


def highway_forward(x_ncl, wtc, btc):
    """x_ncl: (N, C, L) f32 or bf16 (bf16 halves HBM traffic; math stays f32).
    wtc: (n_layers, 2C, C) bf16 stacked [W_t; W_c].  btc: (n_layers, 2C, 1) f32."""
    N, C, L = x_ncl.shape
    n_layers = wtc.shape[0]
    act_bytes = jnp.dtype(x_ncl.dtype).itemsize
    budget = _vmem_budget_bytes()
    tile_l = _choose_tile_l(L, C, n_layers, act_bytes, budget)
    # v7x megacore: with a single batch, guarantee >= 2 parallel grid steps along
    # L whenever a lane-dense split is possible (so both TensorCores get work).
    if N == 1 and tile_l == L and tile_l >= 256:
        tile_l //= 2

    kernel = functools.partial(_highway_kernel, n_layers=n_layers, C=C)

    return pl.pallas_call(
        kernel,
        out_shape=jax.ShapeDtypeStruct((N, C, L), x_ncl.dtype),
        grid_spec=pltpu.PrefetchScalarGridSpec(
            num_scalar_prefetch=0,
            grid=(N, pl.cdiv(L, tile_l)),
            in_specs=[
                pl.BlockSpec((1, C, tile_l), lambda n, l: (n, 0, l)),        # x block
                pl.BlockSpec((n_layers, 2 * C, C), lambda n, l: (0, 0, 0)),  # fused [W_t; W_c]
                pl.BlockSpec((n_layers, 2 * C, 1), lambda n, l: (0, 0, 0)),  # fused [b_t; b_c]
            ],
            out_specs=pl.BlockSpec((1, C, tile_l), lambda n, l: (n, 0, l)),
        ),
        compiler_params=pltpu.CompilerParams(
            dimension_semantics=("parallel", "parallel"),
            vmem_limit_bytes=budget),
        input_output_aliases={0: 0},   # reuse x's HBM buffer for the output
    )(x_ncl, wtc, btc)


def init_highway_params(key, input_size, n_layers):
    """Deterministic init mirroring nn.Conv1d(input_size, input_size, 1) shapes.

    PyTorch weight shape is (C_out, C_in, 1); we squeeze to (C_out, C_in),
    stack [W_t; W_c] into a fused (n_layers, 2C, C) bf16 weight and the biases
    into (n_layers, 2C, 1) f32 so they broadcast over the length axis."""
    C = input_size
    bound = 1.0 / jnp.sqrt(jnp.float32(C))   # conv1d default U(-1/sqrt(fan_in), ...)
    keys = jax.random.split(key, 4 * n_layers)
    w_rows, b_rows = [], []
    for i in range(n_layers):
        k_wt, k_bt, k_wc, k_bc = keys[4 * i: 4 * i + 4]
        wt = jax.random.uniform(k_wt, (C, C), jnp.float32, -bound, bound)
        bt = jax.random.uniform(k_bt, (C, 1), jnp.float32, -bound, bound)
        wc = jax.random.uniform(k_wc, (C, C), jnp.float32, -bound, bound)
        bc = jax.random.uniform(k_bc, (C, 1), jnp.float32, -bound, bound)
        w_rows.append(jnp.concatenate([wt, wc], axis=0))   # (2C, C)
        b_rows.append(jnp.concatenate([bt, bc], axis=0))   # (2C, 1)
    return jnp.stack(w_rows).astype(jnp.bfloat16), jnp.stack(b_rows)


def highway_reference(x_ncl, wtc, btc):
    """Pure-JAX reference of the PyTorch forward (eval mode), precision-matched
    to the kernel (bf16 matmul operands, f32 accumulation/activations)."""
    C = x_ncl.shape[1]
    x = x_ncl.astype(jnp.float32)
    for i in range(wtc.shape[0]):
        xb = x.astype(jnp.bfloat16)
        y = jnp.einsum("oi,nil->nol", wtc[i], xb,
                       preferred_element_type=jnp.float32) + btc[i]
        t = jax.nn.sigmoid(y[:, :C])
        c = y[:, C:]
        x = jnp.maximum(c * t + x * (1.0 - t), 0.0)
    return x.astype(x_ncl.dtype)


if __name__ == "__main__":
    root_key = jax.random.PRNGKey(0)

    def run_case(case_key, N, C, L, n_layers=2, dtype=jnp.float32, tol=2e-3):
        k_x, k_p = jax.random.split(case_key)
        x = jax.random.normal(k_x, (N, C, L), dtype=jnp.float32).astype(dtype)
        wtc, btc = init_highway_params(k_p, C, n_layers)
        # Compute (and block on) the reference first: x's HBM buffer is donated
        # to the kernel via input_output_aliases.
        ref = jax.block_until_ready(highway_reference(x, wtc, btc))
        out = jax.block_until_ready(highway_forward(x, wtc, btc))
        assert out.shape == (N, C, L), out.shape
        assert out.dtype == jnp.dtype(dtype), out.dtype
        assert jnp.allclose(out.astype(jnp.float32), ref.astype(jnp.float32),
                            atol=tol, rtol=tol), \
            f"mismatch vs reference for shape {(N, C, L)} dtype {jnp.dtype(dtype)}"

    keys = jax.random.split(root_key, 5)
    # batch=2, channels=32, seq=16 : single full-extent (small-L) block.
    run_case(keys[0], 2, 32, 16)
    # batch=2, channels=64, seq=384 : lane-dense 256-wide L tiles, multi-step grid.
    run_case(keys[1], 2, 64, 384)
    # batch=1, channels=64, seq=400 : ragged last L tile (bounded writeback + aliasing).
    run_case(keys[2], 1, 64, 400)
    # bf16 activations in HBM (halves x read/write traffic); math stays f32 in VMEM.
    run_case(keys[3], 2, 64, 256, dtype=jnp.bfloat16, tol=2e-2)
    # deep stack -> lax.fori_loop layer loop with dynamic weight indexing.
    run_case(keys[4], 1, 16, 128, n_layers=6)

    print("KERNEL_OK")
</pallas_src>

<mosaic_0001>
module attributes {stable_mosaic.version = 11 : i64} {
  func.func @_highway_kernel(%arg0: i32, %arg1: i32, %arg2: memref<1x32x16xf32, #tpu.memory_space<vmem>>, %arg3: memref<2x64x32xbf16, #tpu.memory_space<vmem>>, %arg4: memref<2x64x1xf32, #tpu.memory_space<vmem>>, %arg5: memref<1x32x16xf32, #tpu.memory_space<vmem>>) attributes {dimension_semantics = [#tpu.dimension_semantics<parallel>, #tpu.dimension_semantics<parallel>], iteration_bounds = array<i64: 2, 1>, scalar_prefetch = 0 : i64, scratch_operands = 0 : i64, tpu.core_type = #tpu.core_type<tc>, window_params = [{transform_indices = @transform_0, window_bounds = array<i64: 1, 32, 16>}, {pipeline_mode = #tpu.pipeline_mode<synchronous>, transform_indices = @transform_1, window_bounds = array<i64: 2, 64, 32>}, {pipeline_mode = #tpu.pipeline_mode<synchronous>, transform_indices = @transform_2, window_bounds = array<i64: 2, 64, 1>}, {transform_indices = @transform_3, window_bounds = array<i64: 1, 32, 16>}]} {
    %c0 = arith.constant 0 : index
    %c0_0 = arith.constant 0 : index
    %c0_1 = arith.constant 0 : index
    %0 = vector.load %arg2[%c0, %c0_0, %c0_1] : memref<1x32x16xf32, #tpu.memory_space<vmem>>, vector<1x32x16xf32>
    %1 = vector.shape_cast %0 : vector<1x32x16xf32> to vector<32x16xf32>
    %2 = arith.truncf %1 : vector<32x16xf32> to vector<32x16xbf16>
    %c0_2 = arith.constant 0 : index
    %c0_3 = arith.constant 0 : index
    %c0_4 = arith.constant 0 : index
    %3 = vector.load %arg3[%c0_2, %c0_3, %c0_4] : memref<2x64x32xbf16, #tpu.memory_space<vmem>>, vector<1x64x32xbf16>
    %4 = vector.shape_cast %3 : vector<1x64x32xbf16> to vector<64x32xbf16>
    %cst = arith.constant dense<0.000000e+00> : vector<64x16xf32>
    %5 = tpu.matmul %4, %2, %cst {dimension_numbers = #tpu.dot_dimension_numbers<[1], [0], [0], [1], [0, 0, 1, 1], [], []>} : vector<64x32xbf16>, vector<32x16xbf16>, vector<64x16xf32> -> vector<64x16xf32>
    %c0_5 = arith.constant 0 : index
    %c0_6 = arith.constant 0 : index
    %c0_7 = arith.constant 0 : index
    %6 = vector.load %arg4[%c0_5, %c0_6, %c0_7] : memref<2x64x1xf32, #tpu.memory_space<vmem>>, vector<1x64x1xf32>
    %7 = vector.shape_cast %6 : vector<1x64x1xf32> to vector<64x1xf32>
    %8 = vector.broadcast %7 : vector<64x1xf32> to vector<64x16xf32>
    %9 = arith.addf %5, %8 : vector<64x16xf32>
    %10 = vector.extract_strided_slice %9 {offsets = [0, 0], sizes = [32, 16], strides = [1, 1]} : vector<64x16xf32> to vector<32x16xf32>
    %11 = arith.negf %10 : vector<32x16xf32>
    %12 = math.exp %11 : vector<32x16xf32>
    %cst_8 = arith.constant 1.000000e+00 : f32
    %13 = vector.broadcast %cst_8 : f32 to vector<32x16xf32>
    %14 = arith.addf %13, %12 : vector<32x16xf32>
    %15 = arith.divf %13, %14 : vector<32x16xf32>
    %16 = vector.extract_strided_slice %9 {offsets = [32, 0], sizes = [32, 16], strides = [1, 1]} : vector<64x16xf32> to vector<32x16xf32>
    %17 = arith.subf %16, %1 : vector<32x16xf32>
    %18 = arith.mulf %15, %17 : vector<32x16xf32>
    %19 = arith.addf %1, %18 : vector<32x16xf32>
    %cst_9 = arith.constant 0.000000e+00 : f32
    %20 = vector.broadcast %cst_9 : f32 to vector<32x16xf32>
    %21 = arith.maximumf %19, %20 : vector<32x16xf32>
    %22 = arith.truncf %21 : vector<32x16xf32> to vector<32x16xbf16>
    %c1 = arith.constant 1 : index
    %c0_10 = arith.constant 0 : index
    %c0_11 = arith.constant 0 : index
    %23 = vector.load %arg3[%c1, %c0_10, %c0_11] : memref<2x64x32xbf16, #tpu.memory_space<vmem>>, vector<1x64x32xbf16>
    %24 = vector.shape_cast %23 : vector<1x64x32xbf16> to vector<64x32xbf16>
    %cst_12 = arith.constant dense<0.000000e+00> : vector<64x16xf32>
    %25 = tpu.matmul %24, %22, %cst_12 {dimension_numbers = #tpu.dot_dimension_numbers<[1], [0], [0], [1], [0, 0, 1, 1], [], []>} : vector<64x32xbf16>, vector<32x16xbf16>, vector<64x16xf32> -> vector<64x16xf32>
    %c1_13 = arith.constant 1 : index
    %c0_14 = arith.constant 0 : index
    %c0_15 = arith.constant 0 : index
    %26 = vector.load %arg4[%c1_13, %c0_14, %c0_15] : memref<2x64x1xf32, #tpu.memory_space<vmem>>, vector<1x64x1xf32>
    %27 = vector.shape_cast %26 : vector<1x64x1xf32> to vector<64x1xf32>
    %28 = vector.broadcast %27 : vector<64x1xf32> to vector<64x16xf32>
    %29 = arith.addf %25, %28 : vector<64x16xf32>
    %30 = vector.extract_strided_slice %29 {offsets = [0, 0], sizes = [32, 16], strides = [1, 1]} : vector<64x16xf32> to vector<32x16xf32>
    %31 = arith.negf %30 : vector<32x16xf32>
    %32 = math.exp %31 : vector<32x16xf32>
    %cst_16 = arith.constant 1.000000e+00 : f32
    %33 = vector.broadcast %cst_16 : f32 to vector<32x16xf32>
    %34 = arith.addf %33, %32 : vector<32x16xf32>
    %35 = arith.divf %33, %34 : vector<32x16xf32>
    %36 = vector.extract_strided_slice %29 {offsets = [32, 0], sizes = [32, 16], strides = [1, 1]} : vector<64x16xf32> to vector<32x16xf32>
    %37 = arith.subf %36, %21 : vector<32x16xf32>
    %38 = arith.mulf %35, %37 : vector<32x16xf32>
    %39 = arith.addf %21, %38 : vector<32x16xf32>
    %cst_17 = arith.constant 0.000000e+00 : f32
    %40 = vector.broadcast %cst_17 : f32 to vector<32x16xf32>
    %41 = arith.maximumf %39, %40 : vector<32x16xf32>
    %c0_18 = arith.constant 0 : index
    %c0_19 = arith.constant 0 : index
    %c0_20 = arith.constant 0 : index
    %42 = vector.load %arg5[%c0_18, %c0_19, %c0_20] : memref<1x32x16xf32, #tpu.memory_space<vmem>>, vector<1x32x16xf32>
    %43 = vector.shape_cast %42 : vector<1x32x16xf32> to vector<32x16xf32>
    %44 = vector.shape_cast %41 : vector<32x16xf32> to vector<1x32x16xf32>
    tpu.vector_store %arg5[%c0_18, %c0_19, %c0_20], %44 {strides = array<i32>} : memref<1x32x16xf32, #tpu.memory_space<vmem>>, vector<1x32x16xf32>,
    return
  }
  func.func @transform_0(%arg0: i32, %arg1: i32) -> (i32, i32, i32) {
    %c0_i32 = arith.constant 0 : i32
    %c0_i32_0 = arith.constant 0 : i32
    return %arg0, %c0_i32, %arg1 : i32, i32, i32
  }
  func.func @transform_1(%arg0: i32, %arg1: i32) -> (i32, i32, i32) {
    %c0_i32 = arith.constant 0 : i32
    %c0_i32_0 = arith.constant 0 : i32
    %c0_i32_1 = arith.constant 0 : i32
    %c0_i32_2 = arith.constant 0 : i32
    return %c0_i32, %c0_i32_0, %c0_i32_1 : i32, i32, i32
  }
  func.func @transform_2(%arg0: i32, %arg1: i32) -> (i32, i32, i32) {
    %c0_i32 = arith.constant 0 : i32
    %c0_i32_0 = arith.constant 0 : i32
    %c0_i32_1 = arith.constant 0 : i32
    %c0_i32_2 = arith.constant 0 : i32
    return %c0_i32, %c0_i32_0, %c0_i32_1 : i32, i32, i32
  }
  func.func @transform_3(%arg0: i32, %arg1: i32) -> (i32, i32, i32) {
    %c0_i32 = arith.constant 0 : i32
    %c0_i32_0 = arith.constant 0 : i32
    return %arg0, %c0_i32, %arg1 : i32, i32, i32
  }
}

</mosaic_0001>

<llo_original>
// kernel: tpu_custom_call.1
$region0: #{tpu_custom_call.1}
  #allocation0 [shape = 'u32[]', space=smem, size = 0x4, offset = 0x4, fixed_abs, tag = 'smem constant byte address 0x4 - core index']
  #allocation1 [shape = 'u32[72,128]{1,0:T(1,128)}', space=vmem, size = 0x9000, scoped, tag = 'internal scratch']
  %s0 = inlined_call_operand.vmem [shape: f32[2,32,16], index: 0, kind: input, shape index: {}, may-alias: {0,3}]
  %s1 = inlined_call_operand.vmem [shape: bf16[2,64,32], index: 1, kind: input, shape index: {}]
  %s2 = inlined_call_operand.vmem [shape: f32[2,64,1], index: 2, kind: input, shape index: {}]
  %s3 = inlined_call_operand.vmem [shape: f32[2,32,16], index: 3, kind: output, shape index: {}, may-alias: {0,3}]
  %s4 = sld [smem:[#allocation0]]
  $region45: #{tpu_custom_call.1} parent=0
    _
  %s6 = ssub.s32 1, %s4
  %s7 = scalar_select 0, %s6, %s4
  loop: start=0, step=1, limit=4
  $region2: #{tpu_custom_call.1} parent=0 // loop_pre_header
    _
  $region3: #{tpu_custom_call.1} parent=0 // loop_header
    %s9 = sphi 0, %s13
    %p10 = scmp.ge.s32.totalorder %s9, 4
    %s16 = sphi 0, %s28
    %s17 = sphi 0, %s24
    %s18 = sphi 0, %s16
    %s19 = sphi 0, %s17
    %s20 = sphi 0, %s18
    %s21 = sphi 0, %s19
    %s33 = sphi 0, %s35
    %s36 = sphi 0, %s33
    %s37 = sphi 0, %s36
    %s53 = sphi 0, %s37
    %s57 = sphi 0, %s57
    %s59 = sphi 0, %s57
    %s60 = sphi 0, %s59
    %s74 = sphi 0, %s60
    %s78 = sphi 0, %s78
    %s80 = sphi 0, %s78
    %s81 = sphi 0, %s80
    %s95 = sphi 0, %s81
    %s103 = sphi 0, %s105
    %s106 = sphi 0, %s103
    %s107 = sphi 0, %s106
    %s123 = sphi 0, %s107
  $region4: #{tpu_custom_call.1} parent=0 // loop_header_branch
    %12 = sbr.rel (%p10) target = $region8
  $region5: #{tpu_custom_call.1} parent=0 // loop_body
    %s14 = ssub.s32 %s9, 1
    %s15 = ssub.s32 %s9, 2
    %s22 = sadd.s32 1, %s17
    %p23 = scmp.ge.s32.totalorder %s22, 1
    %s24 = scalar_select %p23, 0, %s22
    %s25 = sadd.s32 1, %s16
    %s26 = scalar_select %p23, %s25, %s16
    %p27 = scmp.ge.s32.totalorder %s26, 2
    %s28 = scalar_select %p27, 0, %s26
    %s29 = ssub.s32 %s16, %s28
    %s30 = ssub.s32 %s17, %s24
    %s31 = sor.u32 %s29, %s30
    %p32 = scmp.eq.s32.totalorder %s31, 0
    %s34 = sadd.s32 %s33, 1
    %s35 = scalar_select %p32, %s33, %s34
    %p38 = pneg %p32
    %p39 = scmp.eq.s32.totalorder %s9, 1
    %p40 = por %p38, %p39
    %p41 = scmp.ne.s32.totalorder %s33, %s36
    %p42 = scmp.eq.s32.totalorder %s9, 0
    %p43 = por %p41, %p42
    %p44 = scmp.ne.s32.totalorder %s33, %s36
    %p45 = scmp.eq.s32.totalorder %s14, 1
    %p46 = por %p44, %p45
    %p47 = scmp.ne.s32.totalorder %s36, %s37
    %p48 = scmp.eq.s32.totalorder %s14, 0
    %p49 = por %p47, %p48
    %p50 = scmp.ne.s32.totalorder %s36, %s37
    %p51 = scmp.eq.s32.totalorder %s15, 1
    %p52 = por %p50, %p51
    %p54 = scmp.ne.s32.totalorder %s37, %s53
    %p55 = scmp.eq.s32.totalorder %s15, 0
    %p56 = por %p54, %p55
    %s58 = sadd.s32 %s57, 1
    %p61 = scmp.eq.s32.totalorder %s9, 1
    %p62 = scmp.ne.s32.totalorder %s57, %s59
    %p63 = scmp.eq.s32.totalorder %s9, 0
    %p64 = por %p62, %p63
    %p65 = scmp.ne.s32.totalorder %s57, %s59
    %p66 = scmp.eq.s32.totalorder %s14, 1
    %p67 = por %p65, %p66
    %p68 = scmp.ne.s32.totalorder %s59, %s60
    %p69 = scmp.eq.s32.totalorder %s14, 0
    %p70 = por %p68, %p69
    %p71 = scmp.ne.s32.totalorder %s59, %s60
    %p72 = scmp.eq.s32.totalorder %s15, 1
    %p73 = por %p71, %p72
    %p75 = scmp.ne.s32.totalorder %s60, %s74
    %p76 = scmp.eq.s32.totalorder %s15, 0
    %p77 = por %p75, %p76
    %s79 = sadd.s32 %s78, 1
    %p82 = scmp.eq.s32.totalorder %s9, 1
    %p83 = scmp.ne.s32.totalorder %s78, %s80
    %p84 = scmp.eq.s32.totalorder %s9, 0
    %p85 = por %p83, %p84
    %p86 = scmp.ne.s32.totalorder %s78, %s80
    %p87 = scmp.eq.s32.totalorder %s14, 1
    %p88 = por %p86, %p87
    %p89 = scmp.ne.s32.totalorder %s80, %s81
    %p90 = scmp.eq.s32.totalorder %s14, 0
    %p91 = por %p89, %p90
    %p92 = scmp.ne.s32.totalorder %s80, %s81
    %p93 = scmp.eq.s32.totalorder %s15, 1
    %p94 = por %p92, %p93
    %p96 = scmp.ne.s32.totalorder %s81, %s95
    %p97 = scmp.eq.s32.totalorder %s15, 0
    %p98 = por %p96, %p97
    %s99 = ssub.s32 %s16, %s28
    %s100 = ssub.s32 %s17, %s24
    %s101 = sor.u32 %s99, %s100
    %p102 = scmp.eq.s32.totalorder %s101, 0
    %s104 = sadd.s32 %s103, 1
    %s105 = scalar_select %p102, %s103, %s104
    %p108 = pneg %p102
    %p109 = scmp.eq.s32.totalorder %s9, 1
    %p110 = por %p108, %p109
    %p111 = scmp.ne.s32.totalorder %s103, %s106
    %p112 = scmp.eq.s32.totalorder %s9, 0
    %p113 = por %p111, %p112
    %p114 = scmp.ne.s32.totalorder %s103, %s106
    %p115 = scmp.eq.s32.totalorder %s14, 1
    %p116 = por %p114, %p115
    %p117 = scmp.ne.s32.totalorder %s106, %s107
    %p118 = scmp.eq.s32.totalorder %s14, 0
    %p119 = por %p117, %p118
    %p120 = scmp.ne.s32.totalorder %s106, %s107
    %p121 = scmp.eq.s32.totalorder %s15, 1
    %p122 = por %p120, %p121
    %p124 = scmp.ne.s32.totalorder %s107, %s123
    %p125 = scmp.eq.s32.totalorder %s15, 0
    %p126 = por %p124, %p125
    %p127 = scmp.le.s32.totalorder 1, %s9
    %p128 = scmp.lt.s32.totalorder %s9, 3
    %p129 = pnand %p127, %p128
    %p130 = pneg %p129
    // Predicated region
    $region9: #{tpu_custom_call.1} parent=5 // pred_check
      _
    $region10: #{tpu_custom_call.1} parent=5 // pred_check_branch
      %132 = sbr.rel (%p129) target = $region12
    $region11: #{tpu_custom_call.1} parent=5 // pred_region
      %s133 = ssub.s32 %s9, 1
      // Predicated region
      $region13: #{tpu_custom_call.1} parent=11 // pred_check
        %p134 = pneg %p70
      $region14: #{tpu_custom_call.1} parent=11 // pred_check_branch
        %136 = sbr.rel (%p134) target = $region16
      $region15: #{tpu_custom_call.1} parent=11 // pred_region
        _
      $region16: #{tpu_custom_call.1} parent=11 // pred_fallthru
        _
      // Predicated region
      $region17: #{tpu_custom_call.1} parent=11 // pred_check
        %p137 = pneg %p91
      $region18: #{tpu_custom_call.1} parent=11 // pred_check_branch
        %139 = sbr.rel (%p137) target = $region20
      $region19: #{tpu_custom_call.1} parent=11 // pred_region
        _
      $region20: #{tpu_custom_call.1} parent=11 // pred_fallthru
        _
    $region12: #{tpu_custom_call.1} parent=5 // pred_fallthru
      _
    %p140 = scmp.lt.s32.totalorder %s9, 2
    // Predicated region
    $region21: #{tpu_custom_call.1} parent=5 // pred_check
      %p141 = pneg %p140
    $region22: #{tpu_custom_call.1} parent=5 // pred_check_branch
      %143 = sbr.rel (%p141) target = $region24
    $region23: #{tpu_custom_call.1} parent=5 // pred_region
      // Predicated region
      $region25: #{tpu_custom_call.1} parent=23 // pred_check
        %p144 = pneg %p43
      $region26: #{tpu_custom_call.1} parent=23 // pred_check_branch
        %146 = sbr.rel (%p144) target = $region28
      $region27: #{tpu_custom_call.1} parent=23 // pred_region
        %p147 = scmp.lt.s32.totalorder %s16, 1
        %s148 = scalar_select %p147, %s16, 1
        %p149 = scmp.lt.s32.totalorder %s17, 0
        %s150 = scalar_select %p149, %s17, 0
        %s151 = smul.addr %s148, 4
        %s152 = sadd.s32 %s150, %s151
        %s153 = smul.addr %s152, 8
        %s154 = scalar_lea.vmem %s0, %s153
      $region28: #{tpu_custom_call.1} parent=23 // pred_fallthru
        _
    $region24: #{tpu_custom_call.1} parent=5 // pred_fallthru
      _
    %p155 = scmp.le.s32.totalorder 1, %s9
    %p156 = scmp.lt.s32.totalorder %s9, 3
    %p157 = pnand %p155, %p156
    %p158 = pneg %p157
    // Predicated region
    $region29: #{tpu_custom_call.1} parent=5 // pred_check
      _
    $region30: #{tpu_custom_call.1} parent=5 // pred_check_branch
      %160 = sbr.rel (%p157) target = $region32
    $region31: #{tpu_custom_call.1} parent=5 // pred_region
      %s161 = ssub.s32 %s9, 1
      %p162 = scmp.lt.s32.totalorder %s18, 1
      %s163 = scalar_select %p162, %s18, 1
      %p164 = scmp.lt.s32.totalorder %s19, 0
      %s165 = scalar_select %p164, %s19, 0
      %s166 = smul.addr %s163, 4
      %s167 = sadd.s32 %s165, %s166
      %s168 = smul.addr %s167, 8
      %s169 = scalar_lea.vmem %s0, %s168
      %p170 = pneg %p49
      %p171 = pneg %p46
      %p172 = pneg %p70
      %p173 = pneg %p67
      %p174 = pneg %p91
      %p175 = pneg %p88
      %p176 = pneg %p119
      %p177 = pneg %p116
      %p178 = scmp.lt.s32.totalorder %s18, 1
      %s179 = scalar_select %p178, %s18, 1
      %p180 = scmp.lt.s32.totalorder %s19, 0
      %s181 = scalar_select %p180, %s19, 0
      %s182 = smul.addr %s179, 4
      %s183 = sadd.s32 %s181, %s182
      %s184 = smul.addr %s183, 8
      %s185 = scalar_lea.vmem %s3, %s184
      %p186 = scmp.lt.s32.totalorder %s18, 1
      %s187 = scalar_select %p186, %s18, 1
      %p188 = scmp.lt.s32.totalorder %s19, 0
      %s189 = scalar_select %p188, %s19, 0
      %s190 = smul.addr %s187, 4
      %s191 = sadd.s32 %s189, %s190
      %s192 = smul.addr %s191, 8
      %s193 = scalar_lea.vmem %s0, %s192
      %p194 = scmp.lt.s32.totalorder %s18, 1
      %s195 = scalar_select %p194, %s18, 1
      %p196 = scmp.lt.s32.totalorder %s19, 0
      %s197 = scalar_select %p196, %s19, 0
      %s198 = smul.addr %s195, 4
      %s199 = sadd.s32 %s197, %s198
      %s200 = smul.addr %s199, 8
      %s201 = scalar_lea.vmem %s3, %s200
      %v203 = vld [vmem:[%s193] sm:$0xff]
      %v204 = vld [vmem:[%s193 + $0x8] sm:$0xff]
      %v205 = vld [vmem:[%s193 + $0x10] sm:$0xff]
      %v206 = vld [vmem:[%s193 + $0x18] sm:$0xff]
      %v207 = vpack.c.bf16 %v204, %v203
      %v208 = vpack.c.bf16 %v206, %v205
      %v209 = vld [vmem:[%s1] sm:$0xf]
      %v210 = vld [vmem:[%s1 + $0x4] sm:$0xf]
      %v211 = vld [vmem:[%s1 + $0x8] sm:$0xf]
      %v212 = vld [vmem:[%s1 + $0xc] sm:$0xf]
      %v213 = vld [vmem:[%s1 + $0x10] sm:$0xf]
      %v214 = vld [vmem:[%s1 + $0x14] sm:$0xf]
      %v215 = vld [vmem:[%s1 + $0x18] sm:$0xf]
      %v216 = vld [vmem:[%s1 + $0x1c] sm:$0xf]
      %v217 = vld [vmem:[%s2] sm:$0xff]
      %v218 = vld [vmem:[%s2 + $0x8] sm:$0xff]
      %v219 = vld [vmem:[%s2 + $0x10] sm:$0xff]
      %v220 = vld [vmem:[%s2 + $0x18] sm:$0xff]
      %v221 = vld [vmem:[%s2 + $0x20] sm:$0xff]
      %v222 = vld [vmem:[%s2 + $0x28] sm:$0xff]
      %v223 = vld [vmem:[%s2 + $0x30] sm:$0xff]
      %v224 = vld [vmem:[%s2 + $0x38] sm:$0xff]
      %226 = vset.pattern.permute.xlu0 0
      %227 = vperm.xlu0 %226, %v217
      %v228 = vpop.permute.xlu0 %227
      %231 = vset.pattern.permute.xlu0 0
      %232 = vperm.xlu0 %231, %v218
      %v233 = vpop.permute.xlu0 %232
      %236 = vset.pattern.permute.xlu0 0
      %237 = vperm.xlu0 %236, %v219
      %v238 = vpop.permute.xlu0 %237
      %241 = vset.pattern.permute.xlu0 0
      %242 = vperm.xlu0 %241, %v220
      %v243 = vpop.permute.xlu0 %242
      %246 = vset.pattern.permute.xlu0 0
      %247 = vperm.xlu0 %246, %v221
      %v248 = vpop.permute.xlu0 %247
      %251 = vset.pattern.permute.xlu0 0
      %252 = vperm.xlu0 %251, %v222
      %v253 = vpop.permute.xlu0 %252
      %256 = vset.pattern.permute.xlu0 0
      %257 = vperm.xlu0 %256, %v223
      %v258 = vpop.permute.xlu0 %257
      %261 = vset.pattern.permute.xlu0 0
      %262 = vperm.xlu0 %261, %v224
      %v263 = vpop.permute.xlu0 %262
      %v273 = vunpack.c.l.b16 %v209
      %v274 = vunpack.c.l.b16 %v210
      %v275 = vunpack.c.l.b16 %v211
      %v276 = vunpack.c.l.b16 %v212
      %v277 = vunpack.c.l.b16 %v213
      %v278 = vunpack.c.l.b16 %v214
      %v279 = vunpack.c.l.b16 %v215
      %v280 = vunpack.c.l.b16 %v216
      %v281 = vpack.c.b16 %v274, %v273
      %v282 = vpack.c.b16 %v276, %v275
      %v283 = vpack.c.b16 %v278, %v277
      %v284 = vpack.c.b16 %v280, %v279
      %vm285 = vcmask 261120
      %v287 = vsel %vm285, %v281, 0
      %v290 = vsel %vm285, %v282, 0
      %v293 = vsel %vm285, %v283, 0
      %v296 = vsel %vm285, %v284, 0
      %298 = vmatpush.bf16.msra.mxu0 0
      %299 = vmatpush.bf16.msra.mxu0 0
      %300 = vmatpush.bf16.msra.mxu0 0
      %301 = vmatpush.bf16.msra.mxu0 0
      %302 = vmatpush.bf16.msra.mxu0 0
      %303 = vmatpush.bf16.msra.mxu0 0
      %304 = vmatpush.bf16.msra.mxu0 %v208
      %305 = vmatpush.bf16.msra.mxu0 %v207
      %306 = vmatmul.bf16.gmra.mxu0 %v287
      %v307 = vpop.f32.mrf.mxu0
      %v308 = vadd.f32 %v228, %v307
      %v309 = vpop.f32.mrf.mxu0
      %v310 = vadd.f32 %v233, %v309
      %311 = vmatmul.bf16.gmra.mxu0 %v290
      %v312 = vpop.f32.mrf.mxu0
      %v313 = vadd.f32 %v238, %v312
      %v314 = vpop.f32.mrf.mxu0
      %v315 = vadd.f32 %v243, %v314
      %316 = vmatmul.bf16.gmra.mxu0 %v293
      %v317 = vpop.f32.mrf.mxu0
      %v318 = vadd.f32 %v248, %v317
      %v319 = vpop.f32.mrf.mxu0
      %v320 = vadd.f32 %v253, %v319
      %321 = vmatmul.bf16.gmra.mxu0 %v296
      %v322 = vpop.f32.mrf.mxu0
      %v323 = vadd.f32 %v258, %v322
      %v324 = vpop.f32.mrf.mxu0
      %v325 = vadd.f32 %v263, %v324
      %326 = vdwg.mxu0
      %v327 = vxor.u32 %v308, 2147483648
      %v328 = vxor.u32 %v310, 2147483648
      %v329 = vxor.u32 %v313, 2147483648
      %v330 = vxor.u32 %v315, 2147483648
      %v331 = vmul.f32 %v327, 1.442695
      %v332 = vpow.pop %v331
      %v333 = vmul.f32 %v328, 1.442695
      %v334 = vpow.pop %v333
      %v335 = vmul.f32 %v329, 1.442695
      %v336 = vpow.pop %v335
      %v337 = vmul.f32 %v330, 1.442695
      %v338 = vpow.pop %v337
      %v339 = vadd.f32 %v332, 1.0
      %v340 = vadd.f32 %v334, 1.0
      %v341 = vadd.f32 %v336, 1.0
      %v342 = vadd.f32 %v338, 1.0
      %v343 = vrcp.pop %v339
      %v344 = vmul.f32 %v339, %v343
      %v345 = vsub.f32 1.0, %v344
      %v346 = vmul.f32 %v343, %v345
      %v347 = vadd.f32 %v343, %v346
      %vm348 = vweird.f32 %v339
      %vm349 = vweird.f32 %v343
      %vm350 = vmor %vm348, %vm349
      %v351 = vsel %vm350, %v343, %v347
      %v352 = vand.u32 2147483647, %v339
      %vm353 = vcmp.eq.f32.partialorder %v352, 8.507059e+37
      %v354 = vand.u32 %v339, 2147483648
      %v355 = vor.u32 1.1754944e-38, %v354
      %v356 = vsel %vm353, %v355, %v351
      %v357 = vmul.f32 1.0, %v356
      %v358 = vrcp.pop %v340
      %v359 = vmul.f32 %v340, %v358
      %v360 = vsub.f32 1.0, %v359
      %v361 = vmul.f32 %v358, %v360
      %v362 = vadd.f32 %v358, %v361
      %vm363 = vweird.f32 %v340
      %vm364 = vweird.f32 %v358
      %vm365 = vmor %vm363, %vm364
      %v366 = vsel %vm365, %v358, %v362
      %v367 = vand.u32 2147483647, %v340
      %vm368 = vcmp.eq.f32.partialorder %v367, 8.507059e+37
      %v369 = vand.u32 %v340, 2147483648
      %v370 = vor.u32 1.1754944e-38, %v369
      %v371 = vsel %vm368, %v370, %v366
      %v372 = vmul.f32 1.0, %v371
      %v373 = vrcp.pop %v341
      %v374 = vmul.f32 %v341, %v373
      %v375 = vsub.f32 1.0, %v374
      %v376 = vmul.f32 %v373, %v375
      %v377 = vadd.f32 %v373, %v376
      %vm378 = vweird.f32 %v341
      %vm379 = vweird.f32 %v373
      %vm380 = vmor %vm378, %vm379
      %v381 = vsel %vm380, %v373, %v377
      %v382 = vand.u32 2147483647, %v341
      %vm383 = vcmp.eq.f32.partialorder %v382, 8.507059e+37
      %v384 = vand.u32 %v341, 2147483648
      %v385 = vor.u32 1.1754944e-38, %v384
      %v386 = vsel %vm383, %v385, %v381
      %v387 = vmul.f32 1.0, %v386
      %v388 = vrcp.pop %v342
      %v389 = vmul.f32 %v342, %v388
      %v390 = vsub.f32 1.0, %v389
      %v391 = vmul.f32 %v388, %v390
      %v392 = vadd.f32 %v388, %v391
      %vm393 = vweird.f32 %v342
      %vm394 = vweird.f32 %v388
      %vm395 = vmor %vm393, %vm394
      %v396 = vsel %vm395, %v388, %v392
      %v397 = vand.u32 2147483647, %v342
      %vm398 = vcmp.eq.f32.partialorder %v397, 8.507059e+37
      %v399 = vand.u32 %v342, 2147483648
      %v400 = vor.u32 1.1754944e-38, %v399
      %v401 = vsel %vm398, %v400, %v396
      %v402 = vmul.f32 1.0, %v401
      %v403 = vsub.f32 %v318, %v203
      %v404 = vsub.f32 %v320, %v204
      %v405 = vsub.f32 %v323, %v205
      %v406 = vsub.f32 %v325, %v206
      %v407 = vmul.f32 %v357, %v403
      %v408 = vmul.f32 %v372, %v404
      %v409 = vmul.f32 %v387, %v405
      %v410 = vmul.f32 %v402, %v406
      %v411 = vadd.f32 %v203, %v407
      %v412 = vadd.f32 %v204, %v408
      %v413 = vadd.f32 %v205, %v409
      %v414 = vadd.f32 %v206, %v410
      %v415 = vmax.f32 %v411, 0.0
      %v416 = vmax.f32 %v412, 0.0
      %v417 = vmax.f32 %v413, 0.0
      %v418 = vmax.f32 %v414, 0.0
      %v419 = vpack.c.bf16 %v416, %v415
      %v420 = vpack.c.bf16 %v418, %v417
      %s421 = scalar_lea.vmem %s1, 32
      %v422 = vld [vmem:[%s421] sm:$0xf]
      %v423 = vld [vmem:[%s421 + $0x4] sm:$0xf]
      %v424 = vld [vmem:[%s421 + $0x8] sm:$0xf]
      %v425 = vld [vmem:[%s421 + $0xc] sm:$0xf]
      %v426 = vld [vmem:[%s421 + $0x10] sm:$0xf]
      %v427 = vld [vmem:[%s421 + $0x14] sm:$0xf]
      %v428 = vld [vmem:[%s421 + $0x18] sm:$0xf]
      %v429 = vld [vmem:[%s421 + $0x1c] sm:$0xf]
      %s430 = scalar_lea.vmem %s2, 64
      %v431 = vld [vmem:[%s430] sm:$0xff]
      %v432 = vld [vmem:[%s430 + $0x8] sm:$0xff]
      %v433 = vld [vmem:[%s430 + $0x10] sm:$0xff]
      %v434 = vld [vmem:[%s430 + $0x18] sm:$0xff]
      %v435 = vld [vmem:[%s430 + $0x20] sm:$0xff]
      %v436 = vld [vmem:[%s430 + $0x28] sm:$0xff]
      %v437 = vld [vmem:[%s430 + $0x30] sm:$0xff]
      %v438 = vld [vmem:[%s430 + $0x38] sm:$0xff]
      %440 = vset.pattern.permute.xlu0 0
      %441 = vperm.xlu0 %440, %v431
      %v442 = vpop.permute.xlu0 %441
      %445 = vset.pattern.permute.xlu0 0
      %446 = vperm.xlu0 %445, %v432
      %v447 = vpop.permute.xlu0 %446
      %450 = vset.pattern.permute.xlu0 0
      %451 = vperm.xlu0 %450, %v433
      %v452 = vpop.permute.xlu0 %451
      %455 = vset.pattern.permute.xlu0 0
      %456 = vperm.xlu0 %455, %v434
      %v457 = vpop.permute.xlu0 %456
      %460 = vset.pattern.permute.xlu0 0
      %461 = vperm.xlu0 %460, %v435
      %v462 = vpop.permute.xlu0 %461
      %465 = vset.pattern.permute.xlu0 0
      %466 = vperm.xlu0 %465, %v436
      %v467 = vpop.permute.xlu0 %466
      %470 = vset.pattern.permute.xlu0 0
      %471 = vperm.xlu0 %470, %v437
      %v472 = vpop.permute.xlu0 %471
      %475 = vset.pattern.permute.xlu0 0
      %476 = vperm.xlu0 %475, %v438
      %v477 = vpop.permute.xlu0 %476
      %v487 = vunpack.c.l.b16 %v422
      %v488 = vunpack.c.l.b16 %v423
      %v489 = vunpack.c.l.b16 %v424
      %v490 = vunpack.c.l.b16 %v425
      %v491 = vunpack.c.l.b16 %v426
      %v492 = vunpack.c.l.b16 %v427
      %v493 = vunpack.c.l.b16 %v428
      %v494 = vunpack.c.l.b16 %v429
      %v495 = vpack.c.b16 %v488, %v487
      %v496 = vpack.c.b16 %v490, %v489
      %v497 = vpack.c.b16 %v492, %v491
      %v498 = vpack.c.b16 %v494, %v493
      %v500 = vsel %vm285, %v495, 0
      %v503 = vsel %vm285, %v496, 0
      %v506 = vsel %vm285, %v497, 0
      %v509 = vsel %vm285, %v498, 0
      %511 = vmatpush.bf16.msra.mxu0 0
      %512 = vmatpush.bf16.msra.mxu0 0
      %513 = vmatpush.bf16.msra.mxu0 0
      %514 = vmatpush.bf16.msra.mxu0 0
      %515 = vmatpush.bf16.msra.mxu0 0
      %516 = vmatpush.bf16.msra.mxu0 0
      %517 = vmatpush.bf16.msra.mxu0 %v420
      %518 = vmatpush.bf16.msra.mxu0 %v419
      %519 = vmatmul.bf16.gmra.mxu0 %v500
      %v520 = vpop.f32.mrf.mxu0
      %v521 = vadd.f32 %v442, %v520
      %v522 = vpop.f32.mrf.mxu0
      %v523 = vadd.f32 %v447, %v522
      %524 = vmatmul.bf16.gmra.mxu0 %v503
      %v525 = vpop.f32.mrf.mxu0
      %v526 = vadd.f32 %v452, %v525
      %v527 = vpop.f32.mrf.mxu0
      %v528 = vadd.f32 %v457, %v527
      %529 = vmatmul.bf16.gmra.mxu0 %v506
      %v530 = vpop.f32.mrf.mxu0
      %v531 = vadd.f32 %v462, %v530
      %v532 = vpop.f32.mrf.mxu0
      %v533 = vadd.f32 %v467, %v532
      %534 = vmatmul.bf16.gmra.mxu0 %v509
      %v535 = vpop.f32.mrf.mxu0
      %v536 = vadd.f32 %v472, %v535
      %v537 = vpop.f32.mrf.mxu0
      %v538 = vadd.f32 %v477, %v537
      %539 = vdwg.mxu0
      %v540 = vxor.u32 %v521, 2147483648
      %v541 = vxor.u32 %v523, 2147483648
      %v542 = vxor.u32 %v526, 2147483648
      %v543 = vxor.u32 %v528, 2147483648
      %v544 = vmul.f32 %v540, 1.442695
      %v545 = vpow.pop %v544
      %v546 = vmul.f32 %v541, 1.442695
      %v547 = vpow.pop %v546
      %v548 = vmul.f32 %v542, 1.442695
      %v549 = vpow.pop %v548
      %v550 = vmul.f32 %v543, 1.442695
      %v551 = vpow.pop %v550
      %v552 = vadd.f32 %v545, 1.0
      %v553 = vadd.f32 %v547, 1.0
      %v554 = vadd.f32 %v549, 1.0
      %v555 = vadd.f32 %v551, 1.0
      %v556 = vrcp.pop %v552
      %v557 = vmul.f32 %v552, %v556
      %v558 = vsub.f32 1.0, %v557
      %v559 = vmul.f32 %v556, %v558
      %v560 = vadd.f32 %v556, %v559
      %vm561 = vweird.f32 %v552
      %vm562 = vweird.f32 %v556
      %vm563 = vmor %vm561, %vm562
      %v564 = vsel %vm563, %v556, %v560
      %v565 = vand.u32 2147483647, %v552
      %vm566 = vcmp.eq.f32.partialorder %v565, 8.507059e+37
      %v567 = vand.u32 %v552, 2147483648
      %v568 = vor.u32 1.1754944e-38, %v567
      %v569 = vsel %vm566, %v568, %v564
      %v570 = vmul.f32 1.0, %v569
      %v571 = vrcp.pop %v553
      %v572 = vmul.f32 %v553, %v571
      %v573 = vsub.f32 1.0, %v572
      %v574 = vmul.f32 %v571, %v573
      %v575 = vadd.f32 %v571, %v574
      %vm576 = vweird.f32 %v553
      %vm577 = vweird.f32 %v571
      %vm578 = vmor %vm576, %vm577
      %v579 = vsel %vm578, %v571, %v575
      %v580 = vand.u32 2147483647, %v553
      %vm581 = vcmp.eq.f32.partialorder %v580, 8.507059e+37
      %v582 = vand.u32 %v553, 2147483648
      %v583 = vor.u32 1.1754944e-38, %v582
      %v584 = vsel %vm581, %v583, %v579
      %v585 = vmul.f32 1.0, %v584
      %v586 = vrcp.pop %v554
      %v587 = vmul.f32 %v554, %v586
      %v588 = vsub.f32 1.0, %v587
      %v589 = vmul.f32 %v586, %v588
      %v590 = vadd.f32 %v586, %v589
      %vm591 = vweird.f32 %v554
      %vm592 = vweird.f32 %v586
      %vm593 = vmor %vm591, %vm592
      %v594 = vsel %vm593, %v586, %v590
      %v595 = vand.u32 2147483647, %v554
      %vm596 = vcmp.eq.f32.partialorder %v595, 8.507059e+37
      %v597 = vand.u32 %v554, 2147483648
      %v598 = vor.u32 1.1754944e-38, %v597
      %v599 = vsel %vm596, %v598, %v594
      %v600 = vmul.f32 1.0, %v599
      %v601 = vrcp.pop %v555
      %v602 = vmul.f32 %v555, %v601
      %v603 = vsub.f32 1.0, %v602
      %v604 = vmul.f32 %v601, %v603
      %v605 = vadd.f32 %v601, %v604
      %vm606 = vweird.f32 %v555
      %vm607 = vweird.f32 %v601
      %vm608 = vmor %vm606, %vm607
      %v609 = vsel %vm608, %v601, %v605
      %v610 = vand.u32 2147483647, %v555
      %vm611 = vcmp.eq.f32.partialorder %v610, 8.507059e+37
      %v612 = vand.u32 %v555, 2147483648
      %v613 = vor.u32 1.1754944e-38, %v612
      %v614 = vsel %vm611, %v613, %v609
      %v615 = vmul.f32 1.0, %v614
      %v616 = vsub.f32 %v531, %v415
      %v617 = vsub.f32 %v533, %v416
      %v618 = vsub.f32 %v536, %v417
      %v619 = vsub.f32 %v538, %v418
      %v620 = vmul.f32 %v570, %v616
      %v621 = vmul.f32 %v585, %v617
      %v622 = vmul.f32 %v600, %v618
      %v623 = vmul.f32 %v615, %v619
      %v624 = vadd.f32 %v415, %v620
      %v625 = vadd.f32 %v416, %v621
      %v626 = vadd.f32 %v417, %v622
      %v627 = vadd.f32 %v418, %v623
      %v628 = vmax.f32 %v624, 0.0
      %v629 = vmax.f32 %v625, 0.0
      %v630 = vmax.f32 %v626, 0.0
      %v631 = vmax.f32 %v627, 0.0
      %vm632 = vcmask 130048
      %633 = vst.msk [vmem:[%s201] sm:$0xff] %vm632, %v628
      %634 = vst.msk [vmem:[%s201 + $0x8] sm:$0xff] %vm632, %v629
      %635 = vst.msk [vmem:[%s201 + $0x10] sm:$0xff] %vm632, %v630
      %636 = vst.msk [vmem:[%s201 + $0x18] sm:$0xff] %vm632, %v631
      %p637 = scmp.lt.s32.totalorder %s18, 1
      %s638 = scalar_select %p637, %s18, 1
      %p639 = scmp.lt.s32.totalorder %s19, 0
      %s640 = scalar_select %p639, %s19, 0
      %s641 = smul.addr %s638, 4
      %s642 = sadd.s32 %s640, %s641
      %s643 = smul.addr %s642, 8
      %s644 = scalar_lea.vmem %s3, %s643
      // Predicated region
      $region33: #{tpu_custom_call.1} parent=31 // pred_check
        %p645 = pneg %p116
      $region34: #{tpu_custom_call.1} parent=31 // pred_check_branch
        %647 = sbr.rel (%p645) target = $region36
      $region35: #{tpu_custom_call.1} parent=31 // pred_region
        _
      $region36: #{tpu_custom_call.1} parent=31 // pred_fallthru
        _
    $region32: #{tpu_custom_call.1} parent=5 // pred_fallthru
      _
    %p648 = scmp.le.s32.totalorder 2, %s9
    // Predicated region
    $region37: #{tpu_custom_call.1} parent=5 // pred_check
      %p649 = pneg %p648
    $region38: #{tpu_custom_call.1} parent=5 // pred_check_branch
      %651 = sbr.rel (%p649) target = $region40
    $region39: #{tpu_custom_call.1} parent=5 // pred_region
      %s652 = ssub.s32 %s9, 2
      // Predicated region
      $region41: #{tpu_custom_call.1} parent=39 // pred_check
        %p653 = pneg %p122
      $region42: #{tpu_custom_call.1} parent=39 // pred_check_branch
        %655 = sbr.rel (%p653) target = $region44
      $region43: #{tpu_custom_call.1} parent=39 // pred_region
        %p656 = scmp.lt.s32.totalorder %s20, 1
        %s657 = scalar_select %p656, %s20, 1
        %p658 = scmp.lt.s32.totalorder %s21, 0
        %s659 = scalar_select %p658, %s21, 0
        %s660 = smul.addr %s657, 4
        %s661 = sadd.s32 %s659, %s660
        %s662 = smul.addr %s661, 8
        %s663 = scalar_lea.vmem %s3, %s662
      $region44: #{tpu_custom_call.1} parent=39 // pred_fallthru
        _
    $region40: #{tpu_custom_call.1} parent=5 // pred_fallthru
      _
  $region6: #{tpu_custom_call.1} parent=0 // loop_footer
    %s13 = sadd.s32 1, %s9
  $region7: #{tpu_custom_call.1} parent=0 // loop_footer_branch
    %8 = sbr.rel target = $region3
  $region8: #{tpu_custom_call.1} parent=0 // loop_exit
    _

</llo_original>
